<compile_context>
chip_gen: v6e
topology: v6e:2x2x1
jax: 0.10.0
libtpu: 0.0.40
codegen_flags: <defaults>
</compile_context>

<pallas_src>
import jax
import jax.numpy as jnp
from jax.experimental import pallas as pl
from jax.experimental.pallas import tpu as pltpu

EPS = 1e-5


def _upsample_kernel(x_ref, w_ref, y_ref, stat_ref):
    # x_ref:    (TS, Cin)      spatial tile of one batch element, channels last
    # w_ref:    (Cin, 8*Cout)  conv-transpose weight, 8 taps packed into lanes
    # y_ref:    (TS, 8*Cout)   raw (un-normalized) conv output for this tile
    # stat_ref: (2, 8*Cout)    row 0 = sum_S(y), row 1 = sum_S(y*y) for this tile
    x = x_ref[...]
    w = w_ref[...]

    # Single fused MXU matmul covering all 8 conv-transpose taps (lane-dense).
    y = jnp.dot(x, w, preferred_element_type=jnp.float32)
    y_ref[...] = y

    # Partial InstanceNorm moments for this tile (finalized in the glue).
    s_row = jnp.sum(y, axis=0, keepdims=True)        # (1, 8*Cout)  XLU reduce
    q_row = jnp.sum(y * y, axis=0, keepdims=True)    # (1, 8*Cout)
    stat_ref[...] = jnp.concatenate([s_row, q_row], axis=0)


def _pick_tile_s(S, Cin, Cout, x_itemsize, budget_bytes=12 << 20):
    """Largest spatial tile (multiple of 8) whose double-buffered blocks fit a
    VMEM budget sized with headroom for v7x (64 MiB/TC).  S need not divide the
    tile; the wrapper zero-pads the spatial axis up to a tile multiple."""
    C8 = 8 * Cout
    s8 = ((S + 7) // 8) * 8   # whole problem rounded up to a sublane multiple

    def step_bytes(ts):
        # double-buffered x block (compute dtype) + y block (f32) per grid step
        return 2 * ts * (Cin * x_itemsize + C8 * 4)

    ts = 8
    for cand in (2048, 1024, 512, 256, 128, 64, 32, 16, 8):
        if step_bytes(cand) <= budget_bytes:
            ts = cand
            break
    return min(ts, s8)


def upsample_pallas(x_ncdhw, weight, gamma, beta, *, compute_dtype=jnp.bfloat16):
    """x_ncdhw: (N, Cin, D, H, W) float32
       weight:  (Cin, Cout, 2, 2, 2) float32   (PyTorch ConvTranspose3d layout)
       gamma, beta: (Cout,) float32
       returns: (N, Cout, 2D, 2H, 2W) float32
    """
    N, Cin, D, H, W = x_ncdhw.shape
    Cout = weight.shape[1]
    S = D * H * W
    C8 = 8 * Cout

    # Glue: channels-last flatten of the input (bf16 for the MXU / DMA).
    x_flat = (jnp.transpose(x_ncdhw, (0, 2, 3, 4, 1))
              .reshape(N, S, Cin).astype(compute_dtype))
    # Weight as (Cin, 8*Cout): column index = (kd*4 + kh*2 + kw) * Cout + o.
    w_packed = (jnp.transpose(weight, (0, 2, 3, 4, 1))
                .reshape(Cin, C8).astype(compute_dtype))

    TS = _pick_tile_s(S, Cin, Cout, jnp.dtype(compute_dtype).itemsize)
    n_tiles = pl.cdiv(S, TS)
    S_pad = n_tiles * TS
    if S_pad != S:
        # Zero rows -> zero conv output -> zero contribution to the moments.
        x_flat = jnp.pad(x_flat, ((0, 0), (0, S_pad - S), (0, 0)))

    y, stats = pl.pallas_call(
        _upsample_kernel,
        out_shape=(
            jax.ShapeDtypeStruct((N, S_pad, C8), jnp.float32),
            jax.ShapeDtypeStruct((N, n_tiles, 2, C8), jnp.float32),
        ),
        grid_spec=pltpu.PrefetchScalarGridSpec(
            num_scalar_prefetch=0,
            grid=(N, n_tiles),
            in_specs=[
                pl.BlockSpec((None, TS, Cin), lambda n, s: (n, s, 0)),
                pl.BlockSpec((Cin, C8), lambda n, s: (0, 0)),
            ],
            out_specs=(
                pl.BlockSpec((None, TS, C8), lambda n, s: (n, s, 0)),
                pl.BlockSpec((None, None, 2, C8), lambda n, s: (n, s, 0, 0)),
            ),
        ),
        compiler_params=pltpu.CompilerParams(
            dimension_semantics=("parallel", "parallel"),
            vmem_limit_bytes=48 * 1024 * 1024,
        ),
    )(x_flat, w_packed)

    # --- Glue: finalize InstanceNorm stats (f32) --------------------------
    st = jnp.sum(stats, axis=1)                        # (N, 2, 8*Cout): reduce spatial tiles
    st = st.reshape(N, 2, 8, Cout).sum(axis=2)         # fold the 8 taps -> (N, 2, Cout)
    n_tot = jnp.float32(8 * S)                         # true count (padding contributed zeros)
    mean = st[:, 0] / n_tot                            # (N, Cout)
    var = jnp.maximum(st[:, 1] / n_tot - mean * mean, 0.0)   # clamp: E[y^2]-E[y]^2 >= 0
    inv = jax.lax.rsqrt(var + jnp.float32(EPS))
    scale = gamma.reshape(1, Cout).astype(jnp.float32) * inv        # (N, Cout)
    shift = beta.reshape(1, Cout).astype(jnp.float32) - mean * scale

    # --- Glue: normalize + affine fused with the tap interleave -----------
    if S_pad != S:
        y = y[:, :S]
    # y: (N, S, 8*Cout) -> (n, d, h, w, kd, kh, kw, c)
    y = y.reshape(N, D, H, W, 2, 2, 2, Cout)
    y = (y * scale.reshape(N, 1, 1, 1, 1, 1, 1, Cout)
         + shift.reshape(N, 1, 1, 1, 1, 1, 1, Cout))
    # -> (n, c, d, kd, h, kh, w, kw) -> (N, Cout, 2D, 2H, 2W)
    out = jnp.transpose(y, (0, 7, 1, 4, 2, 5, 3, 6))
    return out.reshape(N, Cout, 2 * D, 2 * H, 2 * W).astype(x_ncdhw.dtype)


def upsample_reference(x_ncdhw, weight, gamma, beta):
    """Pure-JAX reference for ConvTranspose3d(k=2,s=2,bias=False) + InstanceNorm3d(affine)."""
    N, Cin, D, H, W = x_ncdhw.shape
    Cout = weight.shape[1]
    # y[n,o,2d+a,2h+b,2w+c] = sum_i x[n,i,d,h,w] * W[i,o,a,b,c]
    y = jnp.einsum("nidhw,ioabc->nodahbwc", x_ncdhw, weight)
    y = y.reshape(N, Cout, 2 * D, 2 * H, 2 * W)
    mean = jnp.mean(y, axis=(2, 3, 4), keepdims=True)
    var = jnp.mean((y - mean) ** 2, axis=(2, 3, 4), keepdims=True)
    yhat = (y - mean) * jax.lax.rsqrt(var + EPS)
    return yhat * gamma.reshape(1, Cout, 1, 1, 1) + beta.reshape(1, Cout, 1, 1, 1)


if __name__ == "__main__":
    key = jax.random.PRNGKey(0)

    def run_case(N, Cin, Cout, D, H, W, case_key):
        kx, kw, kg, kb = jax.random.split(case_key, 4)
        x = jax.random.normal(kx, (N, Cin, D, H, W), dtype=jnp.float32)
        weight = jax.random.normal(kw, (Cin, Cout, 2, 2, 2), dtype=jnp.float32) * 0.1
        gamma = 1.0 + 0.1 * jax.random.normal(kg, (Cout,), dtype=jnp.float32)
        beta = 0.1 * jax.random.normal(kb, (Cout,), dtype=jnp.float32)

        out = jax.block_until_ready(upsample_pallas(x, weight, gamma, beta))
        assert out.shape == (N, Cout, 2 * D, 2 * H, 2 * W)

        # Reference evaluated at the same bf16-rounded input precision the kernel
        # feeds the MXU (accumulation is f32 in both), so tolerances stay tight.
        x_r = x.astype(jnp.bfloat16).astype(jnp.float32)
        w_r = weight.astype(jnp.bfloat16).astype(jnp.float32)
        ref = upsample_reference(x_r, w_r, gamma, beta)
        err = float(jnp.max(jnp.abs(out - ref)))
        assert jnp.allclose(out, ref, atol=2e-3, rtol=2e-3), f"max abs err {err}"

    k1, k2 = jax.random.split(key)
    # Even spatial size (no padding path).
    run_case(2, 8, 4, 4, 4, 4, k1)
    # Odd spatial size (exercises the zero-padded tile path).
    run_case(1, 16, 8, 3, 4, 5, k2)

    print("KERNEL_OK")
</pallas_src>

<mosaic_0001>
module attributes {stable_mosaic.version = 11 : i64} {
  func.func @_upsample_kernel(%arg0: i32, %arg1: i32, %arg2: memref<1x64x8xbf16, #tpu.memory_space<vmem>>, %arg3: memref<8x32xbf16, #tpu.memory_space<vmem>>, %arg4: memref<1x64x32xf32, #tpu.memory_space<vmem>>, %arg5: memref<1x1x2x32xf32, #tpu.memory_space<vmem>>) attributes {dimension_semantics = [#tpu.dimension_semantics<parallel>, #tpu.dimension_semantics<parallel>], iteration_bounds = array<i64: 2, 1>, scalar_prefetch = 0 : i64, scratch_operands = 0 : i64, tpu.core_type = #tpu.core_type<tc>, window_params = [{transform_indices = @transform_0, window_bounds = array<i64: 1, 64, 8>}, {pipeline_mode = #tpu.pipeline_mode<synchronous>, transform_indices = @transform_1, window_bounds = array<i64: 8, 32>}, {transform_indices = @transform_2, window_bounds = array<i64: 1, 64, 32>}, {transform_indices = @transform_3, window_bounds = array<i64: 1, 1, 2, 32>}]} {
    %c0 = arith.constant 0 : index
    %c0_0 = arith.constant 0 : index
    %c0_1 = arith.constant 0 : index
    %0 = vector.load %arg2[%c0, %c0_0, %c0_1] : memref<1x64x8xbf16, #tpu.memory_space<vmem>>, vector<1x64x8xbf16>
    %1 = vector.shape_cast %0 : vector<1x64x8xbf16> to vector<64x8xbf16>
    %c0_2 = arith.constant 0 : index
    %c0_3 = arith.constant 0 : index
    %2 = vector.load %arg3[%c0_2, %c0_3] : memref<8x32xbf16, #tpu.memory_space<vmem>>, vector<8x32xbf16>
    %cst = arith.constant dense<0.000000e+00> : vector<64x32xf32>
    %3 = tpu.matmul %1, %2, %cst {dimension_numbers = #tpu.dot_dimension_numbers<[1], [0], [0], [1], [0, 0, 1, 1], [], []>} : vector<64x8xbf16>, vector<8x32xbf16>, vector<64x32xf32> -> vector<64x32xf32>
    %c0_4 = arith.constant 0 : index
    %c0_5 = arith.constant 0 : index
    %c0_6 = arith.constant 0 : index
    %4 = vector.load %arg4[%c0_4, %c0_5, %c0_6] : memref<1x64x32xf32, #tpu.memory_space<vmem>>, vector<1x64x32xf32>
    %5 = vector.shape_cast %4 : vector<1x64x32xf32> to vector<64x32xf32>
    %6 = vector.shape_cast %3 : vector<64x32xf32> to vector<1x64x32xf32>
    tpu.vector_store %arg4[%c0_4, %c0_5, %c0_6], %6 {strides = array<i32>} : memref<1x64x32xf32, #tpu.memory_space<vmem>>, vector<1x64x32xf32>,
    %cst_7 = arith.constant dense<0.000000e+00> : vector<32xf32>
    %7 = vector.multi_reduction <add>, %3, %cst_7 [0] : vector<64x32xf32> to vector<32xf32>
    %8 = vector.shape_cast %7 : vector<32xf32> to vector<1x32xf32>
    %9 = arith.mulf %3, %3 : vector<64x32xf32>
    %cst_8 = arith.constant dense<0.000000e+00> : vector<32xf32>
    %10 = vector.multi_reduction <add>, %9, %cst_8 [0] : vector<64x32xf32> to vector<32xf32>
    %11 = vector.shape_cast %10 : vector<32xf32> to vector<1x32xf32>
    %12 = tpu.concatenate %8, %11 in 0 : vector<1x32xf32>, vector<1x32xf32> -> vector<2x32xf32>
    %c0_9 = arith.constant 0 : index
    %c0_10 = arith.constant 0 : index
    %c0_11 = arith.constant 0 : index
    %c0_12 = arith.constant 0 : index
    %13 = vector.load %arg5[%c0_9, %c0_10, %c0_11, %c0_12] : memref<1x1x2x32xf32, #tpu.memory_space<vmem>>, vector<1x1x2x32xf32>
    %14 = vector.shape_cast %13 : vector<1x1x2x32xf32> to vector<2x32xf32>
    %15 = vector.shape_cast %12 : vector<2x32xf32> to vector<1x1x2x32xf32>
    tpu.vector_store %arg5[%c0_9, %c0_10, %c0_11, %c0_12], %15 {strides = array<i32>} : memref<1x1x2x32xf32, #tpu.memory_space<vmem>>, vector<1x1x2x32xf32>,
    return
  }
  func.func @transform_0(%arg0: i32, %arg1: i32) -> (i32, i32, i32) {
    %c0_i32 = arith.constant 0 : i32
    %c0_i32_0 = arith.constant 0 : i32
    return %arg0, %arg1, %c0_i32 : i32, i32, i32
  }
  func.func @transform_1(%arg0: i32, %arg1: i32) -> (i32, i32) {
    %c0_i32 = arith.constant 0 : i32
    %c0_i32_0 = arith.constant 0 : i32
    %c0_i32_1 = arith.constant 0 : i32
    return %c0_i32, %c0_i32_0 : i32, i32
  }
  func.func @transform_2(%arg0: i32, %arg1: i32) -> (i32, i32, i32) {
    %c0_i32 = arith.constant 0 : i32
    %c0_i32_0 = arith.constant 0 : i32
    return %arg0, %arg1, %c0_i32 : i32, i32, i32
  }
  func.func @transform_3(%arg0: i32, %arg1: i32) -> (i32, i32, i32, i32) {
    %c0_i32 = arith.constant 0 : i32
    %c0_i32_0 = arith.constant 0 : i32
    %c0_i32_1 = arith.constant 0 : i32
    return %arg0, %arg1, %c0_i32, %c0_i32_0 : i32, i32, i32, i32
  }
}

</mosaic_0001>

<llo_original>
// kernel: tpu_custom_call.1
$region0: #{tpu_custom_call.1}
  #allocation0 [shape = 'u32[]', space=smem, size = 0x4, offset = 0x4, fixed_abs, tag = 'smem constant byte address 0x4 - core index']
  #allocation1 [shape = 'u32[144,128]{1,0:T(1,128)}', space=vmem, size = 0x12000, scoped, tag = 'internal scratch']
  %s0 = inlined_call_operand.vmem [shape: bf16[2,64,8], index: 0, kind: input, shape index: {}]
  %s1 = inlined_call_operand.vmem [shape: bf16[8,32], index: 1, kind: input, shape index: {}]
  %s2 = inlined_call_operand.vmem [shape: f32[2,64,32], index: 2, kind: output, shape index: {0}]
  %s3 = inlined_call_operand.hbm [shape: f32[2,1,2,32], index: 3, kind: output, shape index: {1}]
  %4 = xla_tuple %s2, %s3
  %s5 = sld [smem:[#allocation0]]
  $region49: #{tpu_custom_call.1} parent=0
    _
  %s7 = ssub.s32 1, %s5
  %s8 = scalar_select 0, %s7, %s5
  $region1: #{tpu_custom_call.1} parent=0
    #allocation2 [shape = 'u8[2048]{0}', space=vmem, size = 0x800, scoped, tag = 'output window, operand 1']
    #allocation3 [shape = 's32[2]{0}', space=sflag, size = 0x8, scoped, tag = 'scoped memory for tpu_custom_call.1']
    %9 = vsyncpa [#allocation3], 0
    %s10 = scalar_lea.sflag [#allocation3], 1
    %11 = vsyncpa %s10, 0
    loop: start=0, step=1, limit=4
    $region2: #{tpu_custom_call.1} parent=1 // loop_pre_header
      _
    $region3: #{tpu_custom_call.1} parent=1 // loop_header
      %s13 = sphi 0, %s17
      %p14 = scmp.ge.s32.totalorder %s13, 4
      %s20 = sphi 0, %s32
      %s21 = sphi 0, %s28
      %s22 = sphi 0, %s20
      %s23 = sphi 0, %s21
      %s24 = sphi 0, %s22
      %s25 = sphi 0, %s23
      %s37 = sphi 0, %s39
      %s40 = sphi 0, %s37
      %s41 = sphi 0, %s40
      %s57 = sphi 0, %s41
      %s61 = sphi 0, %s61
      %s63 = sphi 0, %s61
      %s64 = sphi 0, %s63
      %s78 = sphi 0, %s64
      %s86 = sphi 0, %s88
      %s89 = sphi 0, %s86
      %s90 = sphi 0, %s89
      %s106 = sphi 0, %s90
      %s114 = sphi 0, %s116
      %s117 = sphi 0, %s114
      %s118 = sphi 0, %s117
      %s134 = sphi 0, %s118
    $region4: #{tpu_custom_call.1} parent=1 // loop_header_branch
      %16 = sbr.rel (%p14) target = $region8
    $region5: #{tpu_custom_call.1} parent=1 // loop_body
      %s18 = ssub.s32 %s13, 1
      %s19 = ssub.s32 %s13, 2
      %s26 = sadd.s32 1, %s21
      %p27 = scmp.ge.s32.totalorder %s26, 1
      %s28 = scalar_select %p27, 0, %s26
      %s29 = sadd.s32 1, %s20
      %s30 = scalar_select %p27, %s29, %s20
      %p31 = scmp.ge.s32.totalorder %s30, 2
      %s32 = scalar_select %p31, 0, %s30
      %s33 = ssub.s32 %s20, %s32
      %s34 = ssub.s32 %s21, %s28
      %s35 = sor.u32 %s33, %s34
      %p36 = scmp.eq.s32.totalorder %s35, 0
      %s38 = sadd.s32 %s37, 1
      %s39 = scalar_select %p36, %s37, %s38
      %p42 = pneg %p36
      %p43 = scmp.eq.s32.totalorder %s13, 1
      %p44 = por %p42, %p43
      %p45 = scmp.ne.s32.totalorder %s37, %s40
      %p46 = scmp.eq.s32.totalorder %s13, 0
      %p47 = por %p45, %p46
      %p48 = scmp.ne.s32.totalorder %s37, %s40
      %p49 = scmp.eq.s32.totalorder %s18, 1
      %p50 = por %p48, %p49
      %p51 = scmp.ne.s32.totalorder %s40, %s41
      %p52 = scmp.eq.s32.totalorder %s18, 0
      %p53 = por %p51, %p52
      %p54 = scmp.ne.s32.totalorder %s40, %s41
      %p55 = scmp.eq.s32.totalorder %s19, 1
      %p56 = por %p54, %p55
      %p58 = scmp.ne.s32.totalorder %s41, %s57
      %p59 = scmp.eq.s32.totalorder %s19, 0
      %p60 = por %p58, %p59
      %s62 = sadd.s32 %s61, 1
      %p65 = scmp.eq.s32.totalorder %s13, 1
      %p66 = scmp.ne.s32.totalorder %s61, %s63
      %p67 = scmp.eq.s32.totalorder %s13, 0
      %p68 = por %p66, %p67
      %p69 = scmp.ne.s32.totalorder %s61, %s63
      %p70 = scmp.eq.s32.totalorder %s18, 1
      %p71 = por %p69, %p70
      %p72 = scmp.ne.s32.totalorder %s63, %s64
      %p73 = scmp.eq.s32.totalorder %s18, 0
      %p74 = por %p72, %p73
      %p75 = scmp.ne.s32.totalorder %s63, %s64
      %p76 = scmp.eq.s32.totalorder %s19, 1
      %p77 = por %p75, %p76
      %p79 = scmp.ne.s32.totalorder %s64, %s78
      %p80 = scmp.eq.s32.totalorder %s19, 0
      %p81 = por %p79, %p80
      %s82 = ssub.s32 %s20, %s32
      %s83 = ssub.s32 %s21, %s28
      %s84 = sor.u32 %s82, %s83
      %p85 = scmp.eq.s32.totalorder %s84, 0
      %s87 = sadd.s32 %s86, 1
      %s88 = scalar_select %p85, %s86, %s87
      %p91 = pneg %p85
      %p92 = scmp.eq.s32.totalorder %s13, 1
      %p93 = por %p91, %p92
      %p94 = scmp.ne.s32.totalorder %s86, %s89
      %p95 = scmp.eq.s32.totalorder %s13, 0
      %p96 = por %p94, %p95
      %p97 = scmp.ne.s32.totalorder %s86, %s89
      %p98 = scmp.eq.s32.totalorder %s18, 1
      %p99 = por %p97, %p98
      %p100 = scmp.ne.s32.totalorder %s89, %s90
      %p101 = scmp.eq.s32.totalorder %s18, 0
      %p102 = por %p100, %p101
      %p103 = scmp.ne.s32.totalorder %s89, %s90
      %p104 = scmp.eq.s32.totalorder %s19, 1
      %p105 = por %p103, %p104
      %p107 = scmp.ne.s32.totalorder %s90, %s106
      %p108 = scmp.eq.s32.totalorder %s19, 0
      %p109 = por %p107, %p108
      %s110 = ssub.s32 %s20, %s32
      %s111 = ssub.s32 %s21, %s28
      %s112 = sor.u32 %s110, %s111
      %p113 = scmp.eq.s32.totalorder %s112, 0
      %s115 = sadd.s32 %s114, 1
      %s116 = scalar_select %p113, %s114, %s115
      %p119 = pneg %p113
      %p120 = scmp.eq.s32.totalorder %s13, 1
      %p121 = por %p119, %p120
      %p122 = scmp.ne.s32.totalorder %s114, %s117
      %p123 = scmp.eq.s32.totalorder %s13, 0
      %p124 = por %p122, %p123
      %p125 = scmp.ne.s32.totalorder %s114, %s117
      %p126 = scmp.eq.s32.totalorder %s18, 1
      %p127 = por %p125, %p126
      %p128 = scmp.ne.s32.totalorder %s117, %s118
      %p129 = scmp.eq.s32.totalorder %s18, 0
      %p130 = por %p128, %p129
      %p131 = scmp.ne.s32.totalorder %s117, %s118
      %p132 = scmp.eq.s32.totalorder %s19, 1
      %p133 = por %p131, %p132
      %p135 = scmp.ne.s32.totalorder %s118, %s134
      %p136 = scmp.eq.s32.totalorder %s19, 0
      %p137 = por %p135, %p136
      %p138 = scmp.le.s32.totalorder 1, %s13
      %p139 = scmp.lt.s32.totalorder %s13, 3
      %p140 = pnand %p138, %p139
      %p141 = pneg %p140
      // Predicated region
      $region9: #{tpu_custom_call.1} parent=5 // pred_check
        _
      $region10: #{tpu_custom_call.1} parent=5 // pred_check_branch
        %143 = sbr.rel (%p140) target = $region12
      $region11: #{tpu_custom_call.1} parent=5 // pred_region
        %s144 = ssub.s32 %s13, 1
        // Predicated region
        $region13: #{tpu_custom_call.1} parent=11 // pred_check
          %p145 = pneg %p74
        $region14: #{tpu_custom_call.1} parent=11 // pred_check_branch
          %147 = sbr.rel (%p145) target = $region16
        $region15: #{tpu_custom_call.1} parent=11 // pred_region
          _
        $region16: #{tpu_custom_call.1} parent=11 // pred_fallthru
          _
      $region12: #{tpu_custom_call.1} parent=5 // pred_fallthru
        _
      %p148 = scmp.lt.s32.totalorder %s13, 2
      // Predicated region
      $region17: #{tpu_custom_call.1} parent=5 // pred_check
        %p149 = pneg %p148
      $region18: #{tpu_custom_call.1} parent=5 // pred_check_branch
        %151 = sbr.rel (%p149) target = $region20
      $region19: #{tpu_custom_call.1} parent=5 // pred_region
        // Predicated region
        $region21: #{tpu_custom_call.1} parent=19 // pred_check
          %p152 = pneg %p47
        $region22: #{tpu_custom_call.1} parent=19 // pred_check_branch
          %154 = sbr.rel (%p152) target = $region24
        $region23: #{tpu_custom_call.1} parent=19 // pred_region
          %s155 = smul.u32 8, %s21
          %p156 = scmp.lt.s32.totalorder %s20, 1
          %s157 = scalar_select %p156, %s20, 1
          %p158 = scmp.lt.s32.totalorder %s155, 7
          %s159 = scalar_select %p158, %s155, 7
          %s160 = smul.addr %s157, 8
          %s161 = sadd.s32 %s159, %s160
          %s162 = smul.addr %s161, 4
          %s163 = scalar_lea.vmem %s0, %s162
          %s164 = smul.u32 8, %s21
        $region24: #{tpu_custom_call.1} parent=19 // pred_fallthru
          _
      $region20: #{tpu_custom_call.1} parent=5 // pred_fallthru
        _
      %p165 = scmp.le.s32.totalorder 1, %s13
      %p166 = scmp.lt.s32.totalorder %s13, 3
      %p167 = pnand %p165, %p166
      %p168 = pneg %p167
      // Predicated region
      $region25: #{tpu_custom_call.1} parent=5 // pred_check
        _
      $region26: #{tpu_custom_call.1} parent=5 // pred_check_branch
        %170 = sbr.rel (%p167) target = $region28
      $region27: #{tpu_custom_call.1} parent=5 // pred_region
        %s171 = ssub.s32 %s13, 1
        %s172 = smul.u32 8, %s23
        %p173 = scmp.lt.s32.totalorder %s22, 1
        %s174 = scalar_select %p173, %s22, 1
        %p175 = scmp.lt.s32.totalorder %s172, 7
        %s176 = scalar_select %p175, %s172, 7
        %s177 = smul.addr %s174, 8
        %s178 = sadd.s32 %s176, %s177
        %s179 = smul.addr %s178, 4
        %s180 = scalar_lea.vmem %s0, %s179
        %p181 = pneg %p53
        %p182 = pneg %p50
        %p183 = pneg %p74
        %p184 = pneg %p71
        %p185 = pneg %p102
        %p186 = pneg %p99
        %s187 = smul.u32 8, %s23
        %p188 = scmp.lt.s32.totalorder %s22, 1
        %s189 = scalar_select %p188, %s22, 1
        %p190 = scmp.lt.s32.totalorder %s187, 7
        %s191 = scalar_select %p190, %s187, 7
        %s192 = smul.addr %s189, 8
        %s193 = sadd.s32 %s191, %s192
        %s194 = smul.addr %s193, 8
        %s195 = scalar_lea.vmem %s2, %s194
        %p196 = pneg %p130
        %p197 = pneg %p127
        %s198 = sand.u32 %s117, 1
        %s199 = scalar_lea.sflag [#allocation3], %s198
        %s200 = sand.u32 %s117, 1
        %s201 = smul.addr %s200, 2
        %s202 = scalar_lea.vmem [#allocation2], %s201
        %s203 = smul.u32 8, %s23
        %p204 = scmp.lt.s32.totalorder %s22, 1
        %s205 = scalar_select %p204, %s22, 1
        %p206 = scmp.lt.s32.totalorder %s203, 7
        %s207 = scalar_select %p206, %s203, 7
        %s208 = smul.addr %s205, 8
        %s209 = sadd.s32 %s207, %s208
        %s210 = smul.addr %s209, 4
        %s211 = scalar_lea.vmem %s0, %s210
        %s212 = smul.u32 8, %s23
        %s213 = smul.u32 8, %s23
        %p214 = scmp.lt.s32.totalorder %s22, 1
        %s215 = scalar_select %p214, %s22, 1
        %p216 = scmp.lt.s32.totalorder %s213, 7
        %s217 = scalar_select %p216, %s213, 7
        %s218 = smul.addr %s215, 8
        %s219 = sadd.s32 %s217, %s218
        %s220 = smul.addr %s219, 8
        %s221 = scalar_lea.vmem %s2, %s220
        %s222 = smul.u32 8, %s23
        %v224 = vld [vmem:[%s211] sm:$0xf]
        %v225 = vld [vmem:[%s211 + $0x4] sm:$0xf]
        %v226 = vld [vmem:[%s211 + $0x8] sm:$0xf]
        %v227 = vld [vmem:[%s211 + $0xc] sm:$0xf]
        %v228 = vld [vmem:[%s211 + $0x10] sm:$0xf]
        %v229 = vld [vmem:[%s211 + $0x14] sm:$0xf]
        %v230 = vld [vmem:[%s211 + $0x18] sm:$0xf]
        %v231 = vld [vmem:[%s211 + $0x1c] sm:$0xf]
        %v232 = vld [vmem:[%s1] sm:$0xf]
        %v241 = vunpack.c.l.b16 %v224
        %v242 = vunpack.c.l.b16 %v225
        %v243 = vunpack.c.l.b16 %v226
        %v244 = vunpack.c.l.b16 %v227
        %v245 = vunpack.c.l.b16 %v228
        %v246 = vunpack.c.l.b16 %v229
        %v247 = vunpack.c.l.b16 %v230
        %v248 = vunpack.c.l.b16 %v231
        %v249 = vpack.c.b16 %v242, %v241
        %v250 = vpack.c.b16 %v244, %v243
        %v251 = vpack.c.b16 %v246, %v245
        %v252 = vpack.c.b16 %v248, %v247
        %vm253 = vcmask 64512
        %v255 = vsel %vm253, %v249, 0
        %v258 = vsel %vm253, %v250, 0
        %v261 = vsel %vm253, %v251, 0
        %v264 = vsel %vm253, %v252, 0
        %vm266 = vcmask 1043456
        %v268 = vsel %vm266, %v232, 0
        %270 = vmatprep.subr.bf16.mxu0 0
        %271 = vmatpush1.bf16.msra.mxu0 0
        %272 = vmatprep.subr.bf16.mxu0 0
        %273 = vmatpush1.bf16.msra.mxu0 0
        %274 = vmatprep.subr.bf16.mxu0 0
        %275 = vmatpush1.bf16.msra.mxu0 0
        %276 = vmatprep.subr.bf16.mxu0 0
        %277 = vmatpush1.bf16.msra.mxu0 0
        %278 = vmatprep.subr.bf16.mxu0 0
        %279 = vmatpush1.bf16.msra.mxu0 0
        %280 = vmatprep.subr.bf16.mxu0 0
        %281 = vmatpush1.bf16.msra.mxu0 0
        %282 = vmatprep.subr.bf16.mxu0 0
        %283 = vmatpush1.bf16.msra.mxu0 0
        %284 = vmatprep.subr.bf16.mxu0 0
        %285 = vmatpush1.bf16.msra.mxu0 %v268
        %286 = vmatprep.subr.bf16.mxu0 0
        %287 = vmatpush2.bf16.msra.mxu0 0
        %288 = vmatprep.subr.bf16.mxu0 0
        %289 = vmatpush2.bf16.msra.mxu0 0
        %290 = vmatprep.subr.bf16.mxu0 0
        %291 = vmatpush2.bf16.msra.mxu0 0
        %292 = vmatprep.subr.bf16.mxu0 0
        %293 = vmatpush2.bf16.msra.mxu0 0
        %294 = vmatprep.subr.bf16.mxu0 0
        %295 = vmatpush2.bf16.msra.mxu0 0
        %296 = vmatprep.subr.bf16.mxu0 0
        %297 = vmatpush2.bf16.msra.mxu0 0
        %298 = vmatprep.subr.bf16.mxu0 0
        %299 = vmatpush2.bf16.msra.mxu0 0
        %300 = vmatprep.subr.bf16.mxu0 0
        %301 = vmatpush2.bf16.msra.mxu0 0
        %302 = vmatprep.mubr.bf16.mxu0 0
        %303 = vmatmul.mubr.bf16.gmra.mxu0 %v255
        %v304 = vpop.f32.mrf.mxu0
        %v305 = vadd.f32 0.0, %v304
        %v306 = vpop.f32.mrf.mxu0
        %v307 = vpop.f32.mrf.mxu0
        %v308 = vadd.f32 0.0, %v307
        %v309 = vpop.f32.mrf.mxu0
        %310 = vmatprep.mubr.bf16.mxu0 0
        %311 = vmatmul.mubr.bf16.gmra.mxu0 %v258
        %v312 = vpop.f32.mrf.mxu0
        %v313 = vadd.f32 0.0, %v312
        %v314 = vpop.f32.mrf.mxu0
        %v315 = vpop.f32.mrf.mxu0
        %v316 = vadd.f32 0.0, %v315
        %v317 = vpop.f32.mrf.mxu0
        %318 = vmatprep.mubr.bf16.mxu0 0
        %319 = vmatmul.mubr.bf16.gmra.mxu0 %v261
        %v320 = vpop.f32.mrf.mxu0
        %v321 = vadd.f32 0.0, %v320
        %v322 = vpop.f32.mrf.mxu0
        %v323 = vpop.f32.mrf.mxu0
        %v324 = vadd.f32 0.0, %v323
        %v325 = vpop.f32.mrf.mxu0
        %326 = vmatprep.mubr.bf16.mxu0 0
        %327 = vmatmul.mubr.bf16.gmra.mxu0 %v264
        %v328 = vpop.f32.mrf.mxu0
        %v329 = vadd.f32 0.0, %v328
        %v330 = vpop.f32.mrf.mxu0
        %v331 = vpop.f32.mrf.mxu0
        %v332 = vadd.f32 0.0, %v331
        %v333 = vpop.f32.mrf.mxu0
        %334 = vdwg.mxu0
        %vm335 = vcmask 261120
        %336 = vst.msk [vmem:[%s221] sm:$0xff] %vm335, %v305
        %337 = vst.msk [vmem:[%s221 + $0x8] sm:$0xff] %vm335, %v308
        %338 = vst.msk [vmem:[%s221 + $0x10] sm:$0xff] %vm335, %v313
        %339 = vst.msk [vmem:[%s221 + $0x18] sm:$0xff] %vm335, %v316
        %340 = vst.msk [vmem:[%s221 + $0x20] sm:$0xff] %vm335, %v321
        %341 = vst.msk [vmem:[%s221 + $0x28] sm:$0xff] %vm335, %v324
        %342 = vst.msk [vmem:[%s221 + $0x30] sm:$0xff] %vm335, %v329
        %343 = vst.msk [vmem:[%s221 + $0x38] sm:$0xff] %vm335, %v332
        %v344 = vsel %vm335, %v305, 0.0
        %v345 = vsel %vm335, %v308, 0.0
        %v346 = vadd.f32 %v344, %v345
        %v347 = vsel %vm335, %v313, 0.0
        %v348 = vadd.f32 %v346, %v347
        %v349 = vsel %vm335, %v316, 0.0
        %v350 = vadd.f32 %v348, %v349
        %v351 = vsel %vm335, %v321, 0.0
        %v352 = vadd.f32 %v350, %v351
        %v353 = vsel %vm335, %v324, 0.0
        %v354 = vadd.f32 %v352, %v353
        %v355 = vsel %vm335, %v329, 0.0
        %v356 = vadd.f32 %v354, %v355
        %v357 = vsel %vm335, %v332, 0.0
        %v358 = vadd.f32 %v356, %v357
        %v359 = vrot.slane %v358, 4
        %v360 = vadd.f32 %v358, %v359
        %v361 = vrot.slane %v360, 2
        %v362 = vadd.f32 %v360, %v361
        %v363 = vrot.slane %v362, 1
        %v364 = vadd.f32 %v362, %v363
        %v365 = vmul.f32 %v305, %v305
        %v366 = vmul.f32 %v308, %v308
        %v367 = vmul.f32 %v313, %v313
        %v368 = vmul.f32 %v316, %v316
        %v369 = vmul.f32 %v321, %v321
        %v370 = vmul.f32 %v324, %v324
        %v371 = vmul.f32 %v329, %v329
        %v372 = vmul.f32 %v332, %v332
        %v373 = vsel %vm335, %v365, 0.0
        %v374 = vsel %vm335, %v366, 0.0
        %v375 = vadd.f32 %v373, %v374
        %v376 = vsel %vm335, %v367, 0.0
        %v377 = vadd.f32 %v375, %v376
        %v378 = vsel %vm335, %v368, 0.0
        %v379 = vadd.f32 %v377, %v378
        %v380 = vsel %vm335, %v369, 0.0
        %v381 = vadd.f32 %v379, %v380
        %v382 = vsel %vm335, %v370, 0.0
        %v383 = vadd.f32 %v381, %v382
        %v384 = vsel %vm335, %v371, 0.0
        %v385 = vadd.f32 %v383, %v384
        %v386 = vsel %vm335, %v372, 0.0
        %v387 = vadd.f32 %v385, %v386
        %v388 = vrot.slane %v387, 4
        %v389 = vadd.f32 %v387, %v388
        %v390 = vrot.slane %v389, 2
        %v391 = vadd.f32 %v389, %v390
        %v392 = vrot.slane %v391, 1
        %v393 = vadd.f32 %v391, %v392
        %vm394 = vcmask 1040384
        %v395 = vsel %vm394, %v364, %v393
        %vm396 = vcmask 254976
        %397 = vst.msk [vmem:[%s202] sm:$0x3] %vm396, %v395
        %s398 = smul.u32 8, %s23
        %p399 = scmp.lt.s32.totalorder %s22, 1
        %s400 = scalar_select %p399, %s22, 1
        %p401 = scmp.lt.s32.totalorder %s398, 7
        %s402 = scalar_select %p401, %s398, 7
        %s403 = smul.addr %s400, 8
        %s404 = sadd.s32 %s402, %s403
        %s405 = smul.addr %s404, 8
        %s406 = scalar_lea.vmem %s2, %s405
        %s407 = sand.u32 %s117, 1
        %s408 = scalar_lea.sflag [#allocation3], %s407
        %s409 = sand.u32 %s117, 1
        %s410 = smul.addr %s409, 2
        %s411 = scalar_lea.vmem [#allocation2], %s410
        // Predicated region
        $region29: #{tpu_custom_call.1} parent=27 // pred_check
          %p412 = pneg %p99
        $region30: #{tpu_custom_call.1} parent=27 // pred_check_branch
          %414 = sbr.rel (%p412) target = $region32
        $region31: #{tpu_custom_call.1} parent=27 // pred_region
          %s415 = smul.u32 8, %s23
        $region32: #{tpu_custom_call.1} parent=27 // pred_fallthru
          _
        // Predicated region
        $region33: #{tpu_custom_call.1} parent=27 // pred_check
          %p416 = pneg %p127
        $region34: #{tpu_custom_call.1} parent=27 // pred_check_branch
          %418 = sbr.rel (%p416) target = $region36
        $region35: #{tpu_custom_call.1} parent=27 // pred_region
          %s420 = ssub.s32 32, 32
          %421 = vsyncadd %s408, %s420
          %s422 = sadd.s32 %s23, %s22
          %s423 = smul.addr %s422, 32
          %s424 = scalar_lea.hbm %s3, %s423
          %s426 = sshll.u32 %s411, 4
          %s427 = int_to_ptr.vmem [resolvable:$true] %s426
          %429 = dma.vmem_to_hbm [thread:$0]  %s427, 32, %s424, %s408
        $region36: #{tpu_custom_call.1} parent=27 // pred_fallthru
          _
      $region28: #{tpu_custom_call.1} parent=5 // pred_fallthru
        _
      %p430 = scmp.le.s32.totalorder 2, %s13
      // Predicated region
      $region37: #{tpu_custom_call.1} parent=5 // pred_check
        %p431 = pneg %p430
      $region38: #{tpu_custom_call.1} parent=5 // pred_check_branch
        %433 = sbr.rel (%p431) target = $region40
      $region39: #{tpu_custom_call.1} parent=5 // pred_region
        %s434 = ssub.s32 %s13, 2
        // Predicated region
        $region41: #{tpu_custom_call.1} parent=39 // pred_check
          %p435 = pneg %p105
        $region42: #{tpu_custom_call.1} parent=39 // pred_check_branch
          %437 = sbr.rel (%p435) target = $region44
        $region43: #{tpu_custom_call.1} parent=39 // pred_region
          %s438 = smul.u32 8, %s25
          %p439 = scmp.lt.s32.totalorder %s24, 1
          %s440 = scalar_select %p439, %s24, 1
          %p441 = scmp.lt.s32.totalorder %s438, 7
          %s442 = scalar_select %p441, %s438, 7
          %s443 = smul.addr %s440, 8
          %s444 = sadd.s32 %s442, %s443
          %s445 = smul.addr %s444, 8
          %s446 = scalar_lea.vmem %s2, %s445
        $region44: #{tpu_custom_call.1} parent=39 // pred_fallthru
          _
        // Predicated region
        $region45: #{tpu_custom_call.1} parent=39 // pred_check
          %p447 = pneg %p133
        $region46: #{tpu_custom_call.1} parent=39 // pred_check_branch
          %449 = sbr.rel (%p447) target = $region48
        $region47: #{tpu_custom_call.1} parent=39 // pred_region
          %s450 = sand.u32 %s118, 1
          %s451 = scalar_lea.sflag [#allocation3], %s450
          %s452 = sand.u32 %s118, 1
          %s453 = smul.addr %s452, 2
          %s454 = scalar_lea.vmem [#allocation2], %s453
          %455 = dma.done %s451, 32
        $region48: #{tpu_custom_call.1} parent=39 // pred_fallthru
          _
      $region40: #{tpu_custom_call.1} parent=5 // pred_fallthru
        _
    $region6: #{tpu_custom_call.1} parent=1 // loop_footer
      %s17 = sadd.s32 1, %s13
    $region7: #{tpu_custom_call.1} parent=1 // loop_footer_branch
      %12 = sbr.rel target = $region3
    $region8: #{tpu_custom_call.1} parent=1 // loop_exit
      _
    %456 = vsyncpa [#allocation3], 1
    %s457 = scalar_lea.sflag [#allocation3], 1
    %458 = vsyncpa %s457, 1

</llo_original>
